<compile_context>
chip_gen: v5e
topology: v5e:2x2
jax: 0.10.0
libtpu: 0.0.40
codegen_flags: <defaults>
</compile_context>

<pallas_src>
import jax
import jax.numpy as jnp
from jax.experimental import pallas as pl
from jax.experimental.pallas import tpu as pltpu

OUT_PAD = 128  # lane-dense output width (real out_dim = 2 lives in the first lanes)


def siamese_kernel(x1_ref, x2_ref, w_ref, b_ref, o_ref):
    H = x1_ref.shape[1]
    x1 = x1_ref[...]                               # (TB, H) bf16
    x2 = x2_ref[...]                               # (TB, H) bf16
    # |X1 - X2| in f32 (v5e's VPU has no bf16), back to bf16 for the MXU.
    d = jnp.abs(x1.astype(jnp.float32) - x2.astype(jnp.float32)).astype(x1.dtype)
    # Three partial matmuls on static, tile-aligned weight-slice views — this
    # replaces cat([X1, X2, |X1-X2|]) @ W without materializing the concat.
    acc = jnp.dot(x1, w_ref[0:H, :], preferred_element_type=jnp.float32)
    acc = acc + jnp.dot(x2, w_ref[H:2 * H, :], preferred_element_type=jnp.float32)
    acc = acc + jnp.dot(d, w_ref[2 * H:3 * H, :], preferred_element_type=jnp.float32)
    o_ref[...] = (acc + b_ref[...]).astype(o_ref.dtype)


def siamese_forward(x1, x2, w, b, *, block_b=256):
    """x1, x2: (B, H); w: (3H, OUT); b: (OUT,) -> (B, OUT) f32.

    Matches torch: Linear(3H, OUT)(cat([x1, x2, |x1-x2|], -1)), with bf16
    matmul inputs and f32 accumulation.
    """
    B, H = x1.shape
    out_dim = w.shape[1]

    # bf16 activations / weights for the MXU and to halve HBM traffic.
    x1 = x1.astype(jnp.bfloat16)
    x2 = x2.astype(jnp.bfloat16)
    w_p = (jnp.zeros((3 * H, OUT_PAD), jnp.bfloat16)
           .at[:, :out_dim].set(w.astype(jnp.bfloat16)))
    b_p = (jnp.zeros((1, OUT_PAD), jnp.float32)
           .at[0, :out_dim].set(b.astype(jnp.float32)))

    # Batch tile: multiple of 16 (bf16 sublane pack), capped at block_b.
    tb = min(block_b, pl.cdiv(B, 16) * 16)
    b_pad = pl.cdiv(B, tb) * tb
    if b_pad != B:
        pad = b_pad - B
        x1 = jnp.pad(x1, ((0, pad), (0, 0)))
        x2 = jnp.pad(x2, ((0, pad), (0, 0)))

    out = pl.pallas_call(
        siamese_kernel,
        out_shape=jax.ShapeDtypeStruct((b_pad, OUT_PAD), jnp.float32),
        grid=(b_pad // tb,),
        in_specs=[
            pl.BlockSpec((tb, H), lambda i: (i, 0)),           # x1 tile (streamed)
            pl.BlockSpec((tb, H), lambda i: (i, 0)),           # x2 tile (streamed)
            pl.BlockSpec((3 * H, OUT_PAD), lambda i: (0, 0)),  # weight (resident)
            pl.BlockSpec((1, OUT_PAD), lambda i: (0, 0)),      # bias (resident)
        ],
        out_specs=pl.BlockSpec((tb, OUT_PAD), lambda i: (i, 0)),
        compiler_params=pltpu.CompilerParams(
            dimension_semantics=("parallel",),  # shard batch across TCs on v7x
        ),
    )(x1, x2, w_p, b_p)

    return out[:B, :out_dim]


if __name__ == "__main__":
    # Small-but-faithful shapes: the module hard-codes hidden=768, out=2.
    B, H, OUT = 8, 768, 2

    key = jax.random.PRNGKey(0)
    k1, k2, kw, kb = jax.random.split(key, 4)

    x1 = jax.random.normal(k1, (B, H), dtype=jnp.float32)
    x2 = jax.random.normal(k2, (B, H), dtype=jnp.float32)

    # Deterministic Linear(3*768, 2) init, stored as (in_features, out_features)
    # for the kernel's (feat @ W) convention.
    bound = 1.0 / jnp.sqrt(jnp.float32(3 * H))
    w = jax.random.uniform(kw, (3 * H, OUT), dtype=jnp.float32,
                           minval=-bound, maxval=bound)
    b = jax.random.uniform(kb, (OUT,), dtype=jnp.float32,
                           minval=-bound, maxval=bound)

    out = siamese_forward(x1, x2, w, b)
    out = jax.block_until_ready(out)

    # Reference check (plain f32 JAX). Kernel uses bf16 matmul inputs with f32
    # accumulation, so tolerance is relaxed accordingly.
    feat_ref = jnp.concatenate([x1, x2, jnp.abs(x1 - x2)], axis=-1)
    ref = feat_ref @ w + b
    assert out.shape == (B, OUT)
    assert jnp.allclose(out, ref, atol=2e-2, rtol=2e-2), (
        float(jnp.max(jnp.abs(out - ref))))

    print("KERNEL_OK")
</pallas_src>

<mosaic_0001>
module attributes {stable_mosaic.version = 11 : i64} {
  func.func @siamese_kernel(%arg0: i32, %arg1: memref<16x768xbf16, #tpu.memory_space<vmem>>, %arg2: memref<16x768xbf16, #tpu.memory_space<vmem>>, %arg3: memref<2304x128xbf16, #tpu.memory_space<vmem>>, %arg4: memref<1x128xf32, #tpu.memory_space<vmem>>, %arg5: memref<16x128xf32, #tpu.memory_space<vmem>>) attributes {dimension_semantics = [#tpu.dimension_semantics<parallel>], iteration_bounds = array<i64: 1>, scalar_prefetch = 0 : i64, scratch_operands = 0 : i64, tpu.core_type = #tpu.core_type<tc>, window_params = [{transform_indices = @transform_0, window_bounds = array<i64: 16, 768>}, {transform_indices = @transform_1, window_bounds = array<i64: 16, 768>}, {pipeline_mode = #tpu.pipeline_mode<synchronous>, transform_indices = @transform_2, window_bounds = array<i64: 2304, 128>}, {pipeline_mode = #tpu.pipeline_mode<synchronous>, transform_indices = @transform_3, window_bounds = array<i64: 1, 128>}, {transform_indices = @transform_4, window_bounds = array<i64: 16, 128>}]} {
    %c0 = arith.constant 0 : index
    %c0_0 = arith.constant 0 : index
    %0 = vector.load %arg1[%c0, %c0_0] : memref<16x768xbf16, #tpu.memory_space<vmem>>, vector<16x768xbf16>
    %c0_1 = arith.constant 0 : index
    %c0_2 = arith.constant 0 : index
    %1 = vector.load %arg2[%c0_1, %c0_2] : memref<16x768xbf16, #tpu.memory_space<vmem>>, vector<16x768xbf16>
    %2 = arith.extf %0 : vector<16x768xbf16> to vector<16x768xf32>
    %3 = arith.extf %1 : vector<16x768xbf16> to vector<16x768xf32>
    %4 = arith.subf %2, %3 : vector<16x768xf32>
    %5 = math.absf %4 : vector<16x768xf32>
    %6 = arith.truncf %5 : vector<16x768xf32> to vector<16x768xbf16>
    %c0_3 = arith.constant 0 : index
    %c0_4 = arith.constant 0 : index
    %7 = vector.load %arg3[%c0_3, %c0_4] : memref<2304x128xbf16, #tpu.memory_space<vmem>>, vector<768x128xbf16>
    %cst = arith.constant dense<0.000000e+00> : vector<16x128xf32>
    %8 = tpu.matmul %0, %7, %cst {dimension_numbers = #tpu.dot_dimension_numbers<[1], [0], [0], [1], [0, 0, 1, 1], [], []>} : vector<16x768xbf16>, vector<768x128xbf16>, vector<16x128xf32> -> vector<16x128xf32>
    %c768 = arith.constant 768 : index
    %c0_5 = arith.constant 0 : index
    %9 = vector.load %arg3[%c768, %c0_5] : memref<2304x128xbf16, #tpu.memory_space<vmem>>, vector<768x128xbf16>
    %cst_6 = arith.constant dense<0.000000e+00> : vector<16x128xf32>
    %10 = tpu.matmul %1, %9, %cst_6 {dimension_numbers = #tpu.dot_dimension_numbers<[1], [0], [0], [1], [0, 0, 1, 1], [], []>} : vector<16x768xbf16>, vector<768x128xbf16>, vector<16x128xf32> -> vector<16x128xf32>
    %11 = arith.addf %8, %10 : vector<16x128xf32>
    %c1536 = arith.constant 1536 : index
    %c0_7 = arith.constant 0 : index
    %12 = vector.load %arg3[%c1536, %c0_7] : memref<2304x128xbf16, #tpu.memory_space<vmem>>, vector<768x128xbf16>
    %cst_8 = arith.constant dense<0.000000e+00> : vector<16x128xf32>
    %13 = tpu.matmul %6, %12, %cst_8 {dimension_numbers = #tpu.dot_dimension_numbers<[1], [0], [0], [1], [0, 0, 1, 1], [], []>} : vector<16x768xbf16>, vector<768x128xbf16>, vector<16x128xf32> -> vector<16x128xf32>
    %14 = arith.addf %11, %13 : vector<16x128xf32>
    %c0_9 = arith.constant 0 : index
    %c0_10 = arith.constant 0 : index
    %15 = vector.load %arg4[%c0_9, %c0_10] : memref<1x128xf32, #tpu.memory_space<vmem>>, vector<1x128xf32>
    %16 = vector.broadcast %15 : vector<1x128xf32> to vector<16x128xf32>
    %17 = arith.addf %14, %16 : vector<16x128xf32>
    %c0_11 = arith.constant 0 : index
    %c0_12 = arith.constant 0 : index
    %18 = vector.load %arg5[%c0_11, %c0_12] : memref<16x128xf32, #tpu.memory_space<vmem>>, vector<16x128xf32>
    tpu.vector_store %arg5[%c0_11, %c0_12], %17 {strides = array<i32>} : memref<16x128xf32, #tpu.memory_space<vmem>>, vector<16x128xf32>,
    return
  }
  func.func @transform_0(%arg0: i32) -> (i32, i32) {
    %c0_i32 = arith.constant 0 : i32
    %c0_i32_0 = arith.constant 0 : i32
    return %arg0, %c0_i32 : i32, i32
  }
  func.func @transform_1(%arg0: i32) -> (i32, i32) {
    %c0_i32 = arith.constant 0 : i32
    %c0_i32_0 = arith.constant 0 : i32
    return %arg0, %c0_i32 : i32, i32
  }
  func.func @transform_2(%arg0: i32) -> (i32, i32) {
    %c0_i32 = arith.constant 0 : i32
    %c0_i32_0 = arith.constant 0 : i32
    %c0_i32_1 = arith.constant 0 : i32
    return %c0_i32, %c0_i32_0 : i32, i32
  }
  func.func @transform_3(%arg0: i32) -> (i32, i32) {
    %c0_i32 = arith.constant 0 : i32
    %c0_i32_0 = arith.constant 0 : i32
    %c0_i32_1 = arith.constant 0 : i32
    return %c0_i32, %c0_i32_0 : i32, i32
  }
  func.func @transform_4(%arg0: i32) -> (i32, i32) {
    %c0_i32 = arith.constant 0 : i32
    %c0_i32_0 = arith.constant 0 : i32
    return %arg0, %c0_i32 : i32, i32
  }
}

</mosaic_0001>

<llo_original>
// kernel: tpu_custom_call.1
$region0: #{tpu_custom_call.1}
  #allocation0 [shape = 'u32[]', space=smem, size = 0x4, offset = 0x4, fixed_abs, tag = 'smem constant byte address 0x4 - core index']
  #allocation1 [shape = 'u32[72,128]{1,0:T(1,128)}', space=vmem, size = 0x9000, scoped, tag = 'internal scratch']
  %s0 = inlined_call_operand.hbm [shape: bf16[16,768], index: 0, kind: input, shape index: {}]
  %s1 = inlined_call_operand.hbm [shape: bf16[16,768], index: 1, kind: input, shape index: {}]
  %s2 = inlined_call_operand.hbm [shape: bf16[2304,128], index: 2, kind: input, shape index: {}]
  %s3 = inlined_call_operand.vmem [shape: f32[1,128], index: 3, kind: input, shape index: {}]
  %s4 = inlined_call_operand.hbm [shape: f32[16,128], index: 4, kind: output, shape index: {}]
  %s5 = sld [smem:[#allocation0]]
  $region38: #{tpu_custom_call.1} parent=0
    _
  %s7 = ssub.s32 1, %s5
  %s8 = scalar_select 0, %s7, %s5
  $region1: #{tpu_custom_call.1} parent=0
    #allocation2 [shape = 'u8[24576]{0}', space=vmem, size = 0x6000, scoped, tag = 'input window, operand 0, single buffered']
    #allocation3 [shape = 's32[1]{0}', space=sflag, size = 0x4, scoped, tag = 'scoped memory for tpu_custom_call.1']
    #allocation4 [shape = 's32[1]{0}', space=sflag, size = 0x4, scoped, tag = 'scoped memory for tpu_custom_call.1']
    #allocation5 [shape = 'u8[24576]{0}', space=vmem, size = 0x6000, scoped, tag = 'input window, operand 1, single buffered']
    #allocation6 [shape = 's32[1]{0}', space=sflag, size = 0x4, scoped, tag = 'scoped memory for tpu_custom_call.1']
    #allocation7 [shape = 'u8[589824]{0}', space=vmem, size = 0x90000, scoped, tag = 'input window, operand 2, single buffered']
    #allocation8 [shape = 'u8[8192]{0}', space=vmem, size = 0x2000, scoped, tag = 'output window, operand 0, single buffered']
    %9 = vsyncpa [#allocation3], 0
    %10 = vsyncpa [#allocation6], 0
    %11 = vsyncpa [#allocation4], 0
    // Predicated region
    $region2: #{tpu_custom_call.1} parent=1 // pred_check
      _
    $region3: #{tpu_custom_call.1} parent=1 // pred_check_branch
      %13 = sbr.rel (0) target = $region5
    $region4: #{tpu_custom_call.1} parent=1 // pred_region
      %15 = vsyncadd [#allocation3], 0
      %s16 = sshll.u32 %s0, 4
      %s17 = int_to_ptr.hbm [resolvable:$true] %s16
      %s18 = sshll.u32 [#allocation2], 4
      %s19 = int_to_ptr.vmem [resolvable:$true] %s18
      %24 = dma.hbm_to_vmem [thread:$0]  %s17, 768, %s19, [#allocation3], 384, 384, 24
    $region5: #{tpu_custom_call.1} parent=1 // pred_fallthru
      _
    // Predicated region
    $region6: #{tpu_custom_call.1} parent=1 // pred_check
      _
    $region7: #{tpu_custom_call.1} parent=1 // pred_check_branch
      %26 = sbr.rel (0) target = $region9
    $region8: #{tpu_custom_call.1} parent=1 // pred_region
      %28 = vsyncadd [#allocation6], 0
      %s29 = sshll.u32 %s1, 4
      %s30 = int_to_ptr.hbm [resolvable:$true] %s29
      %s31 = sshll.u32 [#allocation5], 4
      %s32 = int_to_ptr.vmem [resolvable:$true] %s31
      %37 = dma.hbm_to_vmem [thread:$0]  %s30, 768, %s32, [#allocation6], 384, 384, 24
    $region9: #{tpu_custom_call.1} parent=1 // pred_fallthru
      _
    // Predicated region
    $region10: #{tpu_custom_call.1} parent=1 // pred_check
      _
    $region11: #{tpu_custom_call.1} parent=1 // pred_check_branch
      %39 = sbr.rel (0) target = $region13
    $region12: #{tpu_custom_call.1} parent=1 // pred_region
      %41 = vsyncadd [#allocation6], 0
      %s42 = sshll.u32 %s2, 4
      %s43 = int_to_ptr.hbm [resolvable:$true] %s42
      %s44 = sshll.u32 [#allocation7], 4
      %s45 = int_to_ptr.vmem [resolvable:$true] %s44
      %50 = dma.hbm_to_vmem [thread:$0]  %s43, 18432, %s45, [#allocation6], 64, 64, 4
    $region13: #{tpu_custom_call.1} parent=1 // pred_fallthru
      _
    // Predicated region
    $region14: #{tpu_custom_call.1} parent=1 // pred_check
      _
    $region15: #{tpu_custom_call.1} parent=1 // pred_check_branch
      %52 = sbr.rel (0) target = $region17
    $region16: #{tpu_custom_call.1} parent=1 // pred_region
      _
    $region17: #{tpu_custom_call.1} parent=1 // pred_fallthru
      _
    // Predicated region
    $region18: #{tpu_custom_call.1} parent=1 // pred_check
      _
    $region19: #{tpu_custom_call.1} parent=1 // pred_check_branch
      %54 = sbr.rel (0) target = $region21
    $region20: #{tpu_custom_call.1} parent=1 // pred_region
      %56 = dma.done [#allocation3], 768
    $region21: #{tpu_custom_call.1} parent=1 // pred_fallthru
      _
    // Predicated region
    $region22: #{tpu_custom_call.1} parent=1 // pred_check
      _
    $region23: #{tpu_custom_call.1} parent=1 // pred_check_branch
      %58 = sbr.rel (0) target = $region25
    $region24: #{tpu_custom_call.1} parent=1 // pred_region
      %60 = dma.done [#allocation6], 768
    $region25: #{tpu_custom_call.1} parent=1 // pred_fallthru
      _
    // Predicated region
    $region26: #{tpu_custom_call.1} parent=1 // pred_check
      _
    $region27: #{tpu_custom_call.1} parent=1 // pred_check_branch
      %62 = sbr.rel (0) target = $region29
    $region28: #{tpu_custom_call.1} parent=1 // pred_region
      %64 = dma.done [#allocation6], 18432
    $region29: #{tpu_custom_call.1} parent=1 // pred_fallthru
      _
    %v65 = vld [vmem:[#allocation2] sm:$0xff]
    %v66 = vld [vmem:[#allocation2 + $0x8] sm:$0xff]
    %v67 = vld [vmem:[#allocation2 + $0x10] sm:$0xff]
    %v68 = vld [vmem:[#allocation2 + $0x18] sm:$0xff]
    %v69 = vld [vmem:[#allocation2 + $0x20] sm:$0xff]
    %v70 = vld [vmem:[#allocation2 + $0x28] sm:$0xff]
    %v71 = vld [vmem:[#allocation5] sm:$0xff]
    %v72 = vld [vmem:[#allocation5 + $0x8] sm:$0xff]
    %v73 = vld [vmem:[#allocation5 + $0x10] sm:$0xff]
    %v74 = vld [vmem:[#allocation5 + $0x18] sm:$0xff]
    %v75 = vld [vmem:[#allocation5 + $0x20] sm:$0xff]
    %v76 = vld [vmem:[#allocation5 + $0x28] sm:$0xff]
    %v77 = vunpack.c.l.bf16 %v65
    %v78 = vunpack.c.h.bf16 %v65
    %v79 = vunpack.c.l.bf16 %v66
    %v80 = vunpack.c.h.bf16 %v66
    %v81 = vunpack.c.l.bf16 %v67
    %v82 = vunpack.c.h.bf16 %v67
    %v83 = vunpack.c.l.bf16 %v68
    %v84 = vunpack.c.h.bf16 %v68
    %v85 = vunpack.c.l.bf16 %v69
    %v86 = vunpack.c.h.bf16 %v69
    %v87 = vunpack.c.l.bf16 %v70
    %v88 = vunpack.c.h.bf16 %v70
    %v89 = vunpack.c.l.bf16 %v71
    %v90 = vunpack.c.h.bf16 %v71
    %v91 = vunpack.c.l.bf16 %v72
    %v92 = vunpack.c.h.bf16 %v72
    %v93 = vunpack.c.l.bf16 %v73
    %v94 = vunpack.c.h.bf16 %v73
    %v95 = vunpack.c.l.bf16 %v74
    %v96 = vunpack.c.h.bf16 %v74
    %v97 = vunpack.c.l.bf16 %v75
    %v98 = vunpack.c.h.bf16 %v75
    %v99 = vunpack.c.l.bf16 %v76
    %v100 = vunpack.c.h.bf16 %v76
    %v101 = vsub.f32 %v77, %v89
    %v102 = vsub.f32 %v78, %v90
    %v103 = vsub.f32 %v79, %v91
    %v104 = vsub.f32 %v80, %v92
    %v105 = vsub.f32 %v81, %v93
    %v106 = vsub.f32 %v82, %v94
    %v107 = vsub.f32 %v83, %v95
    %v108 = vsub.f32 %v84, %v96
    %v109 = vsub.f32 %v85, %v97
    %v110 = vsub.f32 %v86, %v98
    %v111 = vsub.f32 %v87, %v99
    %v112 = vsub.f32 %v88, %v100
    %v113 = vand.u32 2147483647, %v101
    %v114 = vand.u32 2147483647, %v102
    %v115 = vand.u32 2147483647, %v103
    %v116 = vand.u32 2147483647, %v104
    %v117 = vand.u32 2147483647, %v105
    %v118 = vand.u32 2147483647, %v106
    %v119 = vand.u32 2147483647, %v107
    %v120 = vand.u32 2147483647, %v108
    %v121 = vand.u32 2147483647, %v109
    %v122 = vand.u32 2147483647, %v110
    %v123 = vand.u32 2147483647, %v111
    %v124 = vand.u32 2147483647, %v112
    %v125 = vpack.c.bf16 %v119, %v113
    %v126 = vpack.c.bf16 %v120, %v114
    %v127 = vpack.c.bf16 %v121, %v115
    %v128 = vpack.c.bf16 %v122, %v116
    %v129 = vpack.c.bf16 %v123, %v117
    %v130 = vpack.c.bf16 %v124, %v118
    %v131 = vld [vmem:[#allocation7] sm:$0xf]
    %v132 = vld [vmem:[#allocation7 + $0x4] sm:$0xf]
    %v133 = vld [vmem:[#allocation7 + $0x8] sm:$0xf]
    %v134 = vld [vmem:[#allocation7 + $0xc] sm:$0xf]
    %v135 = vld [vmem:[#allocation7 + $0x10] sm:$0xf]
    %v136 = vld [vmem:[#allocation7 + $0x14] sm:$0xf]
    %v137 = vld [vmem:[#allocation7 + $0x18] sm:$0xf]
    %v138 = vld [vmem:[#allocation7 + $0x1c] sm:$0xf]
    %v139 = vld [vmem:[#allocation7 + $0x20] sm:$0xf]
    %v140 = vld [vmem:[#allocation7 + $0x24] sm:$0xf]
    %v141 = vld [vmem:[#allocation7 + $0x28] sm:$0xf]
    %v142 = vld [vmem:[#allocation7 + $0x2c] sm:$0xf]
    %v143 = vld [vmem:[#allocation7 + $0x30] sm:$0xf]
    %v144 = vld [vmem:[#allocation7 + $0x34] sm:$0xf]
    %v145 = vld [vmem:[#allocation7 + $0x38] sm:$0xf]
    %v146 = vld [vmem:[#allocation7 + $0x3c] sm:$0xf]
    %v147 = vld [vmem:[#allocation7 + $0x40] sm:$0xf]
    %v148 = vld [vmem:[#allocation7 + $0x44] sm:$0xf]
    %v149 = vld [vmem:[#allocation7 + $0x48] sm:$0xf]
    %v150 = vld [vmem:[#allocation7 + $0x4c] sm:$0xf]
    %v151 = vld [vmem:[#allocation7 + $0x50] sm:$0xf]
    %v152 = vld [vmem:[#allocation7 + $0x54] sm:$0xf]
    %v153 = vld [vmem:[#allocation7 + $0x58] sm:$0xf]
    %v154 = vld [vmem:[#allocation7 + $0x5c] sm:$0xf]
    %v155 = vld [vmem:[#allocation7 + $0x60] sm:$0xf]
    %v156 = vld [vmem:[#allocation7 + $0x64] sm:$0xf]
    %v157 = vld [vmem:[#allocation7 + $0x68] sm:$0xf]
    %v158 = vld [vmem:[#allocation7 + $0x6c] sm:$0xf]
    %v159 = vld [vmem:[#allocation7 + $0x70] sm:$0xf]
    %v160 = vld [vmem:[#allocation7 + $0x74] sm:$0xf]
    %v161 = vld [vmem:[#allocation7 + $0x78] sm:$0xf]
    %v162 = vld [vmem:[#allocation7 + $0x7c] sm:$0xf]
    %v163 = vld [vmem:[#allocation7 + $0x80] sm:$0xf]
    %v164 = vld [vmem:[#allocation7 + $0x84] sm:$0xf]
    %v165 = vld [vmem:[#allocation7 + $0x88] sm:$0xf]
    %v166 = vld [vmem:[#allocation7 + $0x8c] sm:$0xf]
    %v167 = vld [vmem:[#allocation7 + $0x90] sm:$0xf]
    %v168 = vld [vmem:[#allocation7 + $0x94] sm:$0xf]
    %v169 = vld [vmem:[#allocation7 + $0x98] sm:$0xf]
    %v170 = vld [vmem:[#allocation7 + $0x9c] sm:$0xf]
    %v171 = vld [vmem:[#allocation7 + $0xa0] sm:$0xf]
    %v172 = vld [vmem:[#allocation7 + $0xa4] sm:$0xf]
    %v173 = vld [vmem:[#allocation7 + $0xa8] sm:$0xf]
    %v174 = vld [vmem:[#allocation7 + $0xac] sm:$0xf]
    %v175 = vld [vmem:[#allocation7 + $0xb0] sm:$0xf]
    %v176 = vld [vmem:[#allocation7 + $0xb4] sm:$0xf]
    %v177 = vld [vmem:[#allocation7 + $0xb8] sm:$0xf]
    %v178 = vld [vmem:[#allocation7 + $0xbc] sm:$0xf]
    %v179 = vld [vmem:[#allocation7 + $0xc0] sm:$0xf]
    %v180 = vld [vmem:[#allocation7 + $0xc4] sm:$0xf]
    %v181 = vld [vmem:[#allocation7 + $0xc8] sm:$0xf]
    %v182 = vld [vmem:[#allocation7 + $0xcc] sm:$0xf]
    %v183 = vld [vmem:[#allocation7 + $0xd0] sm:$0xf]
    %v184 = vld [vmem:[#allocation7 + $0xd4] sm:$0xf]
    %v185 = vld [vmem:[#allocation7 + $0xd8] sm:$0xf]
    %v186 = vld [vmem:[#allocation7 + $0xdc] sm:$0xf]
    %v187 = vld [vmem:[#allocation7 + $0xe0] sm:$0xf]
    %v188 = vld [vmem:[#allocation7 + $0xe4] sm:$0xf]
    %v189 = vld [vmem:[#allocation7 + $0xe8] sm:$0xf]
    %v190 = vld [vmem:[#allocation7 + $0xec] sm:$0xf]
    %v191 = vld [vmem:[#allocation7 + $0xf0] sm:$0xf]
    %v192 = vld [vmem:[#allocation7 + $0xf4] sm:$0xf]
    %v193 = vld [vmem:[#allocation7 + $0xf8] sm:$0xf]
    %v194 = vld [vmem:[#allocation7 + $0xfc] sm:$0xf]
    %v195 = vld [vmem:[#allocation7 + $0x100] sm:$0xf]
    %v196 = vld [vmem:[#allocation7 + $0x104] sm:$0xf]
    %v197 = vld [vmem:[#allocation7 + $0x108] sm:$0xf]
    %v198 = vld [vmem:[#allocation7 + $0x10c] sm:$0xf]
    %v199 = vld [vmem:[#allocation7 + $0x110] sm:$0xf]
    %v200 = vld [vmem:[#allocation7 + $0x114] sm:$0xf]
    %v201 = vld [vmem:[#allocation7 + $0x118] sm:$0xf]
    %v202 = vld [vmem:[#allocation7 + $0x11c] sm:$0xf]
    %v203 = vld [vmem:[#allocation7 + $0x120] sm:$0xf]
    %v204 = vld [vmem:[#allocation7 + $0x124] sm:$0xf]
    %v205 = vld [vmem:[#allocation7 + $0x128] sm:$0xf]
    %v206 = vld [vmem:[#allocation7 + $0x12c] sm:$0xf]
    %v207 = vld [vmem:[#allocation7 + $0x130] sm:$0xf]
    %v208 = vld [vmem:[#allocation7 + $0x134] sm:$0xf]
    %v209 = vld [vmem:[#allocation7 + $0x138] sm:$0xf]
    %v210 = vld [vmem:[#allocation7 + $0x13c] sm:$0xf]
    %v211 = vld [vmem:[#allocation7 + $0x140] sm:$0xf]
    %v212 = vld [vmem:[#allocation7 + $0x144] sm:$0xf]
    %v213 = vld [vmem:[#allocation7 + $0x148] sm:$0xf]
    %v214 = vld [vmem:[#allocation7 + $0x14c] sm:$0xf]
    %v215 = vld [vmem:[#allocation7 + $0x150] sm:$0xf]
    %v216 = vld [vmem:[#allocation7 + $0x154] sm:$0xf]
    %v217 = vld [vmem:[#allocation7 + $0x158] sm:$0xf]
    %v218 = vld [vmem:[#allocation7 + $0x15c] sm:$0xf]
    %v219 = vld [vmem:[#allocation7 + $0x160] sm:$0xf]
    %v220 = vld [vmem:[#allocation7 + $0x164] sm:$0xf]
    %v221 = vld [vmem:[#allocation7 + $0x168] sm:$0xf]
    %v222 = vld [vmem:[#allocation7 + $0x16c] sm:$0xf]
    %v223 = vld [vmem:[#allocation7 + $0x170] sm:$0xf]
    %v224 = vld [vmem:[#allocation7 + $0x174] sm:$0xf]
    %v225 = vld [vmem:[#allocation7 + $0x178] sm:$0xf]
    %v226 = vld [vmem:[#allocation7 + $0x17c] sm:$0xf]
    %v227 = vld [vmem:[#allocation7 + $0x180] sm:$0xf]
    %v228 = vld [vmem:[#allocation7 + $0x184] sm:$0xf]
    %v229 = vld [vmem:[#allocation7 + $0x188] sm:$0xf]
    %v230 = vld [vmem:[#allocation7 + $0x18c] sm:$0xf]
    %v231 = vld [vmem:[#allocation7 + $0x190] sm:$0xf]
    %v232 = vld [vmem:[#allocation7 + $0x194] sm:$0xf]
    %v233 = vld [vmem:[#allocation7 + $0x198] sm:$0xf]
    %v234 = vld [vmem:[#allocation7 + $0x19c] sm:$0xf]
    %v235 = vld [vmem:[#allocation7 + $0x1a0] sm:$0xf]
    %v236 = vld [vmem:[#allocation7 + $0x1a4] sm:$0xf]
    %v237 = vld [vmem:[#allocation7 + $0x1a8] sm:$0xf]
    %v238 = vld [vmem:[#allocation7 + $0x1ac] sm:$0xf]
    %v239 = vld [vmem:[#allocation7 + $0x1b0] sm:$0xf]
    %v240 = vld [vmem:[#allocation7 + $0x1b4] sm:$0xf]
    %v241 = vld [vmem:[#allocation7 + $0x1b8] sm:$0xf]
    %v242 = vld [vmem:[#allocation7 + $0x1bc] sm:$0xf]
    %v243 = vld [vmem:[#allocation7 + $0x1c0] sm:$0xf]
    %v244 = vld [vmem:[#allocation7 + $0x1c4] sm:$0xf]
    %v245 = vld [vmem:[#allocation7 + $0x1c8] sm:$0xf]
    %v246 = vld [vmem:[#allocation7 + $0x1cc] sm:$0xf]
    %v247 = vld [vmem:[#allocation7 + $0x1d0] sm:$0xf]
    %v248 = vld [vmem:[#allocation7 + $0x1d4] sm:$0xf]
    %v249 = vld [vmem:[#allocation7 + $0x1d8] sm:$0xf]
    %v250 = vld [vmem:[#allocation7 + $0x1dc] sm:$0xf]
    %v251 = vld [vmem:[#allocation7 + $0x1e0] sm:$0xf]
    %v252 = vld [vmem:[#allocation7 + $0x1e4] sm:$0xf]
    %v253 = vld [vmem:[#allocation7 + $0x1e8] sm:$0xf]
    %v254 = vld [vmem:[#allocation7 + $0x1ec] sm:$0xf]
    %v255 = vld [vmem:[#allocation7 + $0x1f0] sm:$0xf]
    %v256 = vld [vmem:[#allocation7 + $0x1f4] sm:$0xf]
    %v257 = vld [vmem:[#allocation7 + $0x1f8] sm:$0xf]
    %v258 = vld [vmem:[#allocation7 + $0x1fc] sm:$0xf]
    %v259 = vld [vmem:[#allocation7 + $0x200] sm:$0xf]
    %v260 = vld [vmem:[#allocation7 + $0x204] sm:$0xf]
    %v261 = vld [vmem:[#allocation7 + $0x208] sm:$0xf]
    %v262 = vld [vmem:[#allocation7 + $0x20c] sm:$0xf]
    %v263 = vld [vmem:[#allocation7 + $0x210] sm:$0xf]
    %v264 = vld [vmem:[#allocation7 + $0x214] sm:$0xf]
    %v265 = vld [vmem:[#allocation7 + $0x218] sm:$0xf]
    %v266 = vld [vmem:[#allocation7 + $0x21c] sm:$0xf]
    %v267 = vld [vmem:[#allocation7 + $0x220] sm:$0xf]
    %v268 = vld [vmem:[#allocation7 + $0x224] sm:$0xf]
    %v269 = vld [vmem:[#allocation7 + $0x228] sm:$0xf]
    %v270 = vld [vmem:[#allocation7 + $0x22c] sm:$0xf]
    %v271 = vld [vmem:[#allocation7 + $0x230] sm:$0xf]
    %v272 = vld [vmem:[#allocation7 + $0x234] sm:$0xf]
    %v273 = vld [vmem:[#allocation7 + $0x238] sm:$0xf]
    %v274 = vld [vmem:[#allocation7 + $0x23c] sm:$0xf]
    %v275 = vld [vmem:[#allocation7 + $0x240] sm:$0xf]
    %v276 = vld [vmem:[#allocation7 + $0x244] sm:$0xf]
    %v277 = vld [vmem:[#allocation7 + $0x248] sm:$0xf]
    %v278 = vld [vmem:[#allocation7 + $0x24c] sm:$0xf]
    %v279 = vld [vmem:[#allocation7 + $0x250] sm:$0xf]
    %v280 = vld [vmem:[#allocation7 + $0x254] sm:$0xf]
    %v281 = vld [vmem:[#allocation7 + $0x258] sm:$0xf]
    %v282 = vld [vmem:[#allocation7 + $0x25c] sm:$0xf]
    %v283 = vld [vmem:[#allocation7 + $0x260] sm:$0xf]
    %v284 = vld [vmem:[#allocation7 + $0x264] sm:$0xf]
    %v285 = vld [vmem:[#allocation7 + $0x268] sm:$0xf]
    %v286 = vld [vmem:[#allocation7 + $0x26c] sm:$0xf]
    %v287 = vld [vmem:[#allocation7 + $0x270] sm:$0xf]
    %v288 = vld [vmem:[#allocation7 + $0x274] sm:$0xf]
    %v289 = vld [vmem:[#allocation7 + $0x278] sm:$0xf]
    %v290 = vld [vmem:[#allocation7 + $0x27c] sm:$0xf]
    %v291 = vld [vmem:[#allocation7 + $0x280] sm:$0xf]
    %v292 = vld [vmem:[#allocation7 + $0x284] sm:$0xf]
    %v293 = vld [vmem:[#allocation7 + $0x288] sm:$0xf]
    %v294 = vld [vmem:[#allocation7 + $0x28c] sm:$0xf]
    %v295 = vld [vmem:[#allocation7 + $0x290] sm:$0xf]
    %v296 = vld [vmem:[#allocation7 + $0x294] sm:$0xf]
    %v297 = vld [vmem:[#allocation7 + $0x298] sm:$0xf]
    %v298 = vld [vmem:[#allocation7 + $0x29c] sm:$0xf]
    %v299 = vld [vmem:[#allocation7 + $0x2a0] sm:$0xf]
    %v300 = vld [vmem:[#allocation7 + $0x2a4] sm:$0xf]
    %v301 = vld [vmem:[#allocation7 + $0x2a8] sm:$0xf]
    %v302 = vld [vmem:[#allocation7 + $0x2ac] sm:$0xf]
    %v303 = vld [vmem:[#allocation7 + $0x2b0] sm:$0xf]
    %v304 = vld [vmem:[#allocation7 + $0x2b4] sm:$0xf]
    %v305 = vld [vmem:[#allocation7 + $0x2b8] sm:$0xf]
    %v306 = vld [vmem:[#allocation7 + $0x2bc] sm:$0xf]
    %v307 = vld [vmem:[#allocation7 + $0x2c0] sm:$0xf]
    %v308 = vld [vmem:[#allocation7 + $0x2c4] sm:$0xf]
    %v309 = vld [vmem:[#allocation7 + $0x2c8] sm:$0xf]
    %v310 = vld [vmem:[#allocation7 + $0x2cc] sm:$0xf]
    %v311 = vld [vmem:[#allocation7 + $0x2d0] sm:$0xf]
    %v312 = vld [vmem:[#allocation7 + $0x2d4] sm:$0xf]
    %v313 = vld [vmem:[#allocation7 + $0x2d8] sm:$0xf]
    %v314 = vld [vmem:[#allocation7 + $0x2dc] sm:$0xf]
    %v315 = vld [vmem:[#allocation7 + $0x2e0] sm:$0xf]
    %v316 = vld [vmem:[#allocation7 + $0x2e4] sm:$0xf]
    %v317 = vld [vmem:[#allocation7 + $0x2e8] sm:$0xf]
    %v318 = vld [vmem:[#allocation7 + $0x2ec] sm:$0xf]
    %v319 = vld [vmem:[#allocation7 + $0x2f0] sm:$0xf]
    %v320 = vld [vmem:[#allocation7 + $0x2f4] sm:$0xf]
    %v321 = vld [vmem:[#allocation7 + $0x2f8] sm:$0xf]
    %v322 = vld [vmem:[#allocation7 + $0x2fc] sm:$0xf]
    %v329 = vunpack.c.l.b16 %v71
    %v330 = vunpack.c.h.b16 %v71
    %v331 = vunpack.c.l.b16 %v72
    %v332 = vunpack.c.h.b16 %v72
    %v333 = vunpack.c.l.b16 %v73
    %v334 = vunpack.c.h.b16 %v73
    %v335 = vunpack.c.l.b16 %v74
    %v336 = vunpack.c.h.b16 %v74
    %v337 = vunpack.c.l.b16 %v75
    %v338 = vunpack.c.h.b16 %v75
    %v339 = vunpack.c.l.b16 %v76
    %v340 = vunpack.c.h.b16 %v76
    %v341 = vpack.c.b16 %v335, %v329
    %v342 = vpack.c.b16 %v336, %v330
    %v343 = vpack.c.b16 %v337, %v331
    %v344 = vpack.c.b16 %v338, %v332
    %v345 = vpack.c.b16 %v339, %v333
    %v346 = vpack.c.b16 %v340, %v334
    %v449 = vunpack.c.l.b16 %v227
    %v450 = vunpack.c.l.b16 %v228
    %v451 = vunpack.c.l.b16 %v229
    %v452 = vunpack.c.l.b16 %v230
    %v453 = vunpack.c.l.b16 %v231
    %v454 = vunpack.c.l.b16 %v232
    %v455 = vunpack.c.l.b16 %v233
    %v456 = vunpack.c.l.b16 %v234
    %v457 = vunpack.c.l.b16 %v235
    %v458 = vunpack.c.l.b16 %v236
    %v459 = vunpack.c.l.b16 %v237
    %v460 = vunpack.c.l.b16 %v238
    %v461 = vunpack.c.l.b16 %v239
    %v462 = vunpack.c.l.b16 %v240
    %v463 = vunpack.c.l.b16 %v241
    %v464 = vunpack.c.l.b16 %v242
    %v465 = vunpack.c.l.b16 %v243
    %v466 = vunpack.c.l.b16 %v244
    %v467 = vunpack.c.l.b16 %v245
    %v468 = vunpack.c.l.b16 %v246
    %v469 = vunpack.c.l.b16 %v247
    %v470 = vunpack.c.l.b16 %v248
    %v471 = vunpack.c.l.b16 %v249
    %v472 = vunpack.c.l.b16 %v250
    %v473 = vunpack.c.l.b16 %v251
    %v474 = vunpack.c.l.b16 %v252
    %v475 = vunpack.c.l.b16 %v253
    %v476 = vunpack.c.l.b16 %v254
    %v477 = vunpack.c.l.b16 %v255
    %v478 = vunpack.c.l.b16 %v256
    %v479 = vunpack.c.l.b16 %v257
    %v480 = vunpack.c.l.b16 %v258
    %v481 = vunpack.c.l.b16 %v259
    %v482 = vunpack.c.l.b16 %v260
    %v483 = vunpack.c.l.b16 %v261
    %v484 = vunpack.c.l.b16 %v262
    %v485 = vunpack.c.l.b16 %v263
    %v486 = vunpack.c.l.b16 %v264
    %v487 = vunpack.c.l.b16 %v265
    %v488 = vunpack.c.l.b16 %v266
    %v489 = vunpack.c.l.b16 %v267
    %v490 = vunpack.c.l.b16 %v268
    %v491 = vunpack.c.l.b16 %v269
    %v492 = vunpack.c.l.b16 %v270
    %v493 = vunpack.c.l.b16 %v271
    %v494 = vunpack.c.l.b16 %v272
    %v495 = vunpack.c.l.b16 %v273
    %v496 = vunpack.c.l.b16 %v274
    %v497 = vunpack.c.l.b16 %v275
    %v498 = vunpack.c.l.b16 %v276
    %v499 = vunpack.c.l.b16 %v277
    %v500 = vunpack.c.l.b16 %v278
    %v501 = vunpack.c.l.b16 %v279
    %v502 = vunpack.c.l.b16 %v280
    %v503 = vunpack.c.l.b16 %v281
    %v504 = vunpack.c.l.b16 %v282
    %v505 = vunpack.c.l.b16 %v283
    %v506 = vunpack.c.l.b16 %v284
    %v507 = vunpack.c.l.b16 %v285
    %v508 = vunpack.c.l.b16 %v286
    %v509 = vunpack.c.l.b16 %v287
    %v510 = vunpack.c.l.b16 %v288
    %v511 = vunpack.c.l.b16 %v289
    %v512 = vunpack.c.l.b16 %v290
    %v513 = vunpack.c.l.b16 %v291
    %v514 = vunpack.c.l.b16 %v292
    %v515 = vunpack.c.l.b16 %v293
    %v516 = vunpack.c.l.b16 %v294
    %v517 = vunpack.c.l.b16 %v295
    %v518 = vunpack.c.l.b16 %v296
    %v519 = vunpack.c.l.b16 %v297
    %v520 = vunpack.c.l.b16 %v298
    %v521 = vunpack.c.l.b16 %v299
    %v522 = vunpack.c.l.b16 %v300
    %v523 = vunpack.c.l.b16 %v301
    %v524 = vunpack.c.l.b16 %v302
    %v525 = vunpack.c.l.b16 %v303
    %v526 = vunpack.c.l.b16 %v304
    %v527 = vunpack.c.l.b16 %v305
    %v528 = vunpack.c.l.b16 %v306
    %v529 = vunpack.c.l.b16 %v307
    %v530 = vunpack.c.l.b16 %v308
    %v531 = vunpack.c.l.b16 %v309
    %v532 = vunpack.c.l.b16 %v310
    %v533 = vunpack.c.l.b16 %v311
    %v534 = vunpack.c.l.b16 %v312
    %v535 = vunpack.c.l.b16 %v313
    %v536 = vunpack.c.l.b16 %v314
    %v537 = vunpack.c.l.b16 %v315
    %v538 = vunpack.c.l.b16 %v316
    %v539 = vunpack.c.l.b16 %v317
    %v540 = vunpack.c.l.b16 %v318
    %v541 = vunpack.c.l.b16 %v319
    %v542 = vunpack.c.l.b16 %v320
    %v543 = vunpack.c.l.b16 %v321
    %v544 = vunpack.c.l.b16 %v322
    %v545 = vpack.c.b16 %v450, %v449
    %v546 = vpack.c.b16 %v452, %v451
    %v547 = vpack.c.b16 %v454, %v453
    %v548 = vpack.c.b16 %v456, %v455
    %v549 = vpack.c.b16 %v458, %v457
    %v550 = vpack.c.b16 %v460, %v459
    %v551 = vpack.c.b16 %v462, %v461
    %v552 = vpack.c.b16 %v464, %v463
    %v553 = vpack.c.b16 %v466, %v465
    %v554 = vpack.c.b16 %v468, %v467
    %v555 = vpack.c.b16 %v470, %v469
    %v556 = vpack.c.b16 %v472, %v471
    %v557 = vpack.c.b16 %v474, %v473
    %v558 = vpack.c.b16 %v476, %v475
    %v559 = vpack.c.b16 %v478, %v477
    %v560 = vpack.c.b16 %v480, %v479
    %v561 = vpack.c.b16 %v482, %v481
    %v562 = vpack.c.b16 %v484, %v483
    %v563 = vpack.c.b16 %v486, %v485
    %v564 = vpack.c.b16 %v488, %v487
    %v565 = vpack.c.b16 %v490, %v489
    %v566 = vpack.c.b16 %v492, %v491
    %v567 = vpack.c.b16 %v494, %v493
    %v568 = vpack.c.b16 %v496, %v495
    %v569 = vpack.c.b16 %v498, %v497
    %v570 = vpack.c.b16 %v500, %v499
    %v571 = vpack.c.b16 %v502, %v501
    %v572 = vpack.c.b16 %v504, %v503
    %v573 = vpack.c.b16 %v506, %v505
    %v574 = vpack.c.b16 %v508, %v507
    %v575 = vpack.c.b16 %v510, %v509
    %v576 = vpack.c.b16 %v512, %v511
    %v577 = vpack.c.b16 %v514, %v513
    %v578 = vpack.c.b16 %v516, %v515
    %v579 = vpack.c.b16 %v518, %v517
    %v580 = vpack.c.b16 %v520, %v519
    %v581 = vpack.c.b16 %v522, %v521
    %v582 = vpack.c.b16 %v524, %v523
    %v583 = vpack.c.b16 %v526, %v525
    %v584 = vpack.c.b16 %v528, %v527
    %v585 = vpack.c.b16 %v530, %v529
    %v586 = vpack.c.b16 %v532, %v531
    %v587 = vpack.c.b16 %v534, %v533
    %v588 = vpack.c.b16 %v536, %v535
    %v589 = vpack.c.b16 %v538, %v537
    %v590 = vpack.c.b16 %v540, %v539
    %v591 = vpack.c.b16 %v542, %v541
    %v592 = vpack.c.b16 %v544, %v543
    %641 = vmatpush.bf16.msra.mxu0 %v552
    %642 = vmatpush.bf16.msra.mxu0 %v551
    %643 = vmatpush.bf16.msra.mxu0 %v550
    %644 = vmatpush.bf16.msra.mxu0 %v549
    %645 = vmatpush.bf16.msra.mxu0 %v548
    %646 = vmatpush.bf16.msra.mxu0 %v547
    %647 = vmatpush.bf16.msra.mxu0 %v546
    %648 = vmatpush.bf16.msra.mxu0 %v545
    %649 = vmatmul.bf16.gmra.mxu0 %v341
    %v650 = vpop.f32.mrf.mxu0
    %v651 = vadd.f32 0.0, %v650
    %v652 = vpop.f32.mrf.mxu0
    %v653 = vadd.f32 0.0, %v652
    %654 = vdwg.mxu0
    %655 = vmatpush.bf16.msra.mxu0 %v560
    %656 = vmatpush.bf16.msra.mxu0 %v559
    %657 = vmatpush.bf16.msra.mxu0 %v558
    %658 = vmatpush.bf16.msra.mxu0 %v557
    %659 = vmatpush.bf16.msra.mxu0 %v556
    %660 = vmatpush.bf16.msra.mxu0 %v555
    %661 = vmatpush.bf16.msra.mxu0 %v554
    %662 = vmatpush.bf16.msra.mxu0 %v553
    %663 = vmatmul.bf16.gmra.mxu0 %v342
    %v664 = vpop.f32.mrf.mxu0
    %v665 = vadd.f32 %v651, %v664
    %v666 = vpop.f32.mrf.mxu0
    %v667 = vadd.f32 %v653, %v666
    %668 = vdwg.mxu0
    %669 = vmatpush.bf16.msra.mxu0 %v568
    %670 = vmatpush.bf16.msra.mxu0 %v567
    %671 = vmatpush.bf16.msra.mxu0 %v566
    %672 = vmatpush.bf16.msra.mxu0 %v565
    %673 = vmatpush.bf16.msra.mxu0 %v564
    %674 = vmatpush.bf16.msra.mxu0 %v563
    %675 = vmatpush.bf16.msra.mxu0 %v562
    %676 = vmatpush.bf16.msra.mxu0 %v561
    %677 = vmatmul.bf16.gmra.mxu0 %v343
    %v678 = vpop.f32.mrf.mxu0
    %v679 = vadd.f32 %v665, %v678
    %v680 = vpop.f32.mrf.mxu0
    %v681 = vadd.f32 %v667, %v680
    %682 = vdwg.mxu0
    %683 = vmatpush.bf16.msra.mxu0 %v576
    %684 = vmatpush.bf16.msra.mxu0 %v575
    %685 = vmatpush.bf16.msra.mxu0 %v574
    %686 = vmatpush.bf16.msra.mxu0 %v573
    %687 = vmatpush.bf16.msra.mxu0 %v572
    %688 = vmatpush.bf16.msra.mxu0 %v571
    %689 = vmatpush.bf16.msra.mxu0 %v570
    %690 = vmatpush.bf16.msra.mxu0 %v569
    %691 = vmatmul.bf16.gmra.mxu0 %v344
    %v692 = vpop.f32.mrf.mxu0
    %v693 = vadd.f32 %v679, %v692
    %v694 = vpop.f32.mrf.mxu0
    %v695 = vadd.f32 %v681, %v694
    %696 = vdwg.mxu0
    %697 = vmatpush.bf16.msra.mxu0 %v584
    %698 = vmatpush.bf16.msra.mxu0 %v583
    %699 = vmatpush.bf16.msra.mxu0 %v582
    %700 = vmatpush.bf16.msra.mxu0 %v581
    %701 = vmatpush.bf16.msra.mxu0 %v580
    %702 = vmatpush.bf16.msra.mxu0 %v579
    %703 = vmatpush.bf16.msra.mxu0 %v578
    %704 = vmatpush.bf16.msra.mxu0 %v577
    %705 = vmatmul.bf16.gmra.mxu0 %v345
    %v706 = vpop.f32.mrf.mxu0
    %v707 = vadd.f32 %v693, %v706
    %v708 = vpop.f32.mrf.mxu0
    %v709 = vadd.f32 %v695, %v708
    %710 = vdwg.mxu0
    %711 = vmatpush.bf16.msra.mxu0 %v592
    %712 = vmatpush.bf16.msra.mxu0 %v591
    %713 = vmatpush.bf16.msra.mxu0 %v590
    %714 = vmatpush.bf16.msra.mxu0 %v589
    %715 = vmatpush.bf16.msra.mxu0 %v588
    %716 = vmatpush.bf16.msra.mxu0 %v587
    %717 = vmatpush.bf16.msra.mxu0 %v586
    %718 = vmatpush.bf16.msra.mxu0 %v585
    %719 = vmatmul.bf16.gmra.mxu0 %v346
    %v720 = vpop.f32.mrf.mxu0
    %v721 = vadd.f32 %v707, %v720
    %v722 = vpop.f32.mrf.mxu0
    %v723 = vadd.f32 %v709, %v722
    %724 = vdwg.mxu0
    %v731 = vunpack.c.l.b16 %v65
    %v732 = vunpack.c.h.b16 %v65
    %v733 = vunpack.c.l.b16 %v66
    %v734 = vunpack.c.h.b16 %v66
    %v735 = vunpack.c.l.b16 %v67
    %v736 = vunpack.c.h.b16 %v67
    %v737 = vunpack.c.l.b16 %v68
    %v738 = vunpack.c.h.b16 %v68
    %v739 = vunpack.c.l.b16 %v69
    %v740 = vunpack.c.h.b16 %v69
    %v741 = vunpack.c.l.b16 %v70
    %v742 = vunpack.c.h.b16 %v70
    %v743 = vpack.c.b16 %v737, %v731
    %v744 = vpack.c.b16 %v738, %v732
    %v745 = vpack.c.b16 %v739, %v733
    %v746 = vpack.c.b16 %v740, %v734
    %v747 = vpack.c.b16 %v741, %v735
    %v748 = vpack.c.b16 %v742, %v736
    %v851 = vunpack.c.l.b16 %v131
    %v852 = vunpack.c.l.b16 %v132
    %v853 = vunpack.c.l.b16 %v133
    %v854 = vunpack.c.l.b16 %v134
    %v855 = vunpack.c.l.b16 %v135
    %v856 = vunpack.c.l.b16 %v136
    %v857 = vunpack.c.l.b16 %v137
    %v858 = vunpack.c.l.b16 %v138
    %v859 = vunpack.c.l.b16 %v139
    %v860 = vunpack.c.l.b16 %v140
    %v861 = vunpack.c.l.b16 %v141
    %v862 = vunpack.c.l.b16 %v142
    %v863 = vunpack.c.l.b16 %v143
    %v864 = vunpack.c.l.b16 %v144
    %v865 = vunpack.c.l.b16 %v145
    %v866 = vunpack.c.l.b16 %v146
    %v867 = vunpack.c.l.b16 %v147
    %v868 = vunpack.c.l.b16 %v148
    %v869 = vunpack.c.l.b16 %v149
    %v870 = vunpack.c.l.b16 %v150
    %v871 = vunpack.c.l.b16 %v151
    %v872 = vunpack.c.l.b16 %v152
    %v873 = vunpack.c.l.b16 %v153
    %v874 = vunpack.c.l.b16 %v154
    %v875 = vunpack.c.l.b16 %v155
    %v876 = vunpack.c.l.b16 %v156
    %v877 = vunpack.c.l.b16 %v157
    %v878 = vunpack.c.l.b16 %v158
    %v879 = vunpack.c.l.b16 %v159
    %v880 = vunpack.c.l.b16 %v160
    %v881 = vunpack.c.l.b16 %v161
    %v882 = vunpack.c.l.b16 %v162
    %v883 = vunpack.c.l.b16 %v163
    %v884 = vunpack.c.l.b16 %v164
    %v885 = vunpack.c.l.b16 %v165
    %v886 = vunpack.c.l.b16 %v166
    %v887 = vunpack.c.l.b16 %v167
    %v888 = vunpack.c.l.b16 %v168
    %v889 = vunpack.c.l.b16 %v169
    %v890 = vunpack.c.l.b16 %v170
    %v891 = vunpack.c.l.b16 %v171
    %v892 = vunpack.c.l.b16 %v172
    %v893 = vunpack.c.l.b16 %v173
    %v894 = vunpack.c.l.b16 %v174
    %v895 = vunpack.c.l.b16 %v175
    %v896 = vunpack.c.l.b16 %v176
    %v897 = vunpack.c.l.b16 %v177
    %v898 = vunpack.c.l.b16 %v178
    %v899 = vunpack.c.l.b16 %v179
    %v900 = vunpack.c.l.b16 %v180
    %v901 = vunpack.c.l.b16 %v181
    %v902 = vunpack.c.l.b16 %v182
    %v903 = vunpack.c.l.b16 %v183
    %v904 = vunpack.c.l.b16 %v184
    %v905 = vunpack.c.l.b16 %v185
    %v906 = vunpack.c.l.b16 %v186
    %v907 = vunpack.c.l.b16 %v187
    %v908 = vunpack.c.l.b16 %v188
    %v909 = vunpack.c.l.b16 %v189
    %v910 = vunpack.c.l.b16 %v190
    %v911 = vunpack.c.l.b16 %v191
    %v912 = vunpack.c.l.b16 %v192
    %v913 = vunpack.c.l.b16 %v193
    %v914 = vunpack.c.l.b16 %v194
    %v915 = vunpack.c.l.b16 %v195
    %v916 = vunpack.c.l.b16 %v196
    %v917 = vunpack.c.l.b16 %v197
    %v918 = vunpack.c.l.b16 %v198
    %v919 = vunpack.c.l.b16 %v199
    %v920 = vunpack.c.l.b16 %v200
    %v921 = vunpack.c.l.b16 %v201
    %v922 = vunpack.c.l.b16 %v202
    %v923 = vunpack.c.l.b16 %v203
    %v924 = vunpack.c.l.b16 %v204
    %v925 = vunpack.c.l.b16 %v205
    %v926 = vunpack.c.l.b16 %v206
    %v927 = vunpack.c.l.b16 %v207
    %v928 = vunpack.c.l.b16 %v208
    %v929 = vunpack.c.l.b16 %v209
    %v930 = vunpack.c.l.b16 %v210
    %v931 = vunpack.c.l.b16 %v211
    %v932 = vunpack.c.l.b16 %v212
    %v933 = vunpack.c.l.b16 %v213
    %v934 = vunpack.c.l.b16 %v214
    %v935 = vunpack.c.l.b16 %v215
    %v936 = vunpack.c.l.b16 %v216
    %v937 = vunpack.c.l.b16 %v217
    %v938 = vunpack.c.l.b16 %v218
    %v939 = vunpack.c.l.b16 %v219
    %v940 = vunpack.c.l.b16 %v220
    %v941 = vunpack.c.l.b16 %v221
    %v942 = vunpack.c.l.b16 %v222
    %v943 = vunpack.c.l.b16 %v223
    %v944 = vunpack.c.l.b16 %v224
    %v945 = vunpack.c.l.b16 %v225
    %v946 = vunpack.c.l.b16 %v226
    %v947 = vpack.c.b16 %v852, %v851
    %v948 = vpack.c.b16 %v854, %v853
    %v949 = vpack.c.b16 %v856, %v855
    %v950 = vpack.c.b16 %v858, %v857
    %v951 = vpack.c.b16 %v860, %v859
    %v952 = vpack.c.b16 %v862, %v861
    %v953 = vpack.c.b16 %v864, %v863
    %v954 = vpack.c.b16 %v866, %v865
    %v955 = vpack.c.b16 %v868, %v867
    %v956 = vpack.c.b16 %v870, %v869
    %v957 = vpack.c.b16 %v872, %v871
    %v958 = vpack.c.b16 %v874, %v873
    %v959 = vpack.c.b16 %v876, %v875
    %v960 = vpack.c.b16 %v878, %v877
    %v961 = vpack.c.b16 %v880, %v879
    %v962 = vpack.c.b16 %v882, %v881
    %v963 = vpack.c.b16 %v884, %v883
    %v964 = vpack.c.b16 %v886, %v885
    %v965 = vpack.c.b16 %v888, %v887
    %v966 = vpack.c.b16 %v890, %v889
    %v967 = vpack.c.b16 %v892, %v891
    %v968 = vpack.c.b16 %v894, %v893
    %v969 = vpack.c.b16 %v896, %v895
    %v970 = vpack.c.b16 %v898, %v897
    %v971 = vpack.c.b16 %v900, %v899
    %v972 = vpack.c.b16 %v902, %v901
    %v973 = vpack.c.b16 %v904, %v903
    %v974 = vpack.c.b16 %v906, %v905
    %v975 = vpack.c.b16 %v908, %v907
    %v976 = vpack.c.b16 %v910, %v909
    %v977 = vpack.c.b16 %v912, %v911
    %v978 = vpack.c.b16 %v914, %v913
    %v979 = vpack.c.b16 %v916, %v915
    %v980 = vpack.c.b16 %v918, %v917
    %v981 = vpack.c.b16 %v920, %v919
    %v982 = vpack.c.b16 %v922, %v921
    %v983 = vpack.c.b16 %v924, %v923
    %v984 = vpack.c.b16 %v926, %v925
    %v985 = vpack.c.b16 %v928, %v927
    %v986 = vpack.c.b16 %v930, %v929
    %v987 = vpack.c.b16 %v932, %v931
    %v988 = vpack.c.b16 %v934, %v933
    %v989 = vpack.c.b16 %v936, %v935
    %v990 = vpack.c.b16 %v938, %v937
    %v991 = vpack.c.b16 %v940, %v939
    %v992 = vpack.c.b16 %v942, %v941
    %v993 = vpack.c.b16 %v944, %v943
    %v994 = vpack.c.b16 %v946, %v945
    %1043 = vmatpush.bf16.msra.mxu0 %v954
    %1044 = vmatpush.bf16.msra.mxu0 %v953
    %1045 = vmatpush.bf16.msra.mxu0 %v952
    %1046 = vmatpush.bf16.msra.mxu0 %v951
    %1047 = vmatpush.bf16.msra.mxu0 %v950
    %1048 = vmatpush.bf16.msra.mxu0 %v949
    %1049 = vmatpush.bf16.msra.mxu0 %v948
    %1050 = vmatpush.bf16.msra.mxu0 %v947
    %1051 = vmatmul.bf16.gmra.mxu0 %v743
    %v1052 = vpop.f32.mrf.mxu0
    %v1053 = vadd.f32 %v721, %v1052
    %v1054 = vpop.f32.mrf.mxu0
    %v1055 = vadd.f32 %v723, %v1054
    %1056 = vdwg.mxu0
    %1057 = vmatpush.bf16.msra.mxu0 %v962
    %1058 = vmatpush.bf16.msra.mxu0 %v961
    %1059 = vmatpush.bf16.msra.mxu0 %v960
    %1060 = vmatpush.bf16.msra.mxu0 %v959
    %1061 = vmatpush.bf16.msra.mxu0 %v958
    %1062 = vmatpush.bf16.msra.mxu0 %v957
    %1063 = vmatpush.bf16.msra.mxu0 %v956
    %1064 = vmatpush.bf16.msra.mxu0 %v955
    %1065 = vmatmul.bf16.gmra.mxu0 %v744
    %v1066 = vpop.f32.mrf.mxu0
    %v1067 = vadd.f32 %v1053, %v1066
    %v1068 = vpop.f32.mrf.mxu0
    %v1069 = vadd.f32 %v1055, %v1068
    %1070 = vdwg.mxu0
    %1071 = vmatpush.bf16.msra.mxu0 %v970
    %1072 = vmatpush.bf16.msra.mxu0 %v969
    %1073 = vmatpush.bf16.msra.mxu0 %v968
    %1074 = vmatpush.bf16.msra.mxu0 %v967
    %1075 = vmatpush.bf16.msra.mxu0 %v966
    %1076 = vmatpush.bf16.msra.mxu0 %v965
    %1077 = vmatpush.bf16.msra.mxu0 %v964
    %1078 = vmatpush.bf16.msra.mxu0 %v963
    %1079 = vmatmul.bf16.gmra.mxu0 %v745
    %v1080 = vpop.f32.mrf.mxu0
    %v1081 = vadd.f32 %v1067, %v1080
    %v1082 = vpop.f32.mrf.mxu0
    %v1083 = vadd.f32 %v1069, %v1082
    %1084 = vdwg.mxu0
    %1085 = vmatpush.bf16.msra.mxu0 %v978
    %1086 = vmatpush.bf16.msra.mxu0 %v977
    %1087 = vmatpush.bf16.msra.mxu0 %v976
    %1088 = vmatpush.bf16.msra.mxu0 %v975
    %1089 = vmatpush.bf16.msra.mxu0 %v974
    %1090 = vmatpush.bf16.msra.mxu0 %v973
    %1091 = vmatpush.bf16.msra.mxu0 %v972
    %1092 = vmatpush.bf16.msra.mxu0 %v971
    %1093 = vmatmul.bf16.gmra.mxu0 %v746
    %v1094 = vpop.f32.mrf.mxu0
    %v1095 = vadd.f32 %v1081, %v1094
    %v1096 = vpop.f32.mrf.mxu0
    %v1097 = vadd.f32 %v1083, %v1096
    %1098 = vdwg.mxu0
    %1099 = vmatpush.bf16.msra.mxu0 %v986
    %1100 = vmatpush.bf16.msra.mxu0 %v985
    %1101 = vmatpush.bf16.msra.mxu0 %v984
    %1102 = vmatpush.bf16.msra.mxu0 %v983
    %1103 = vmatpush.bf16.msra.mxu0 %v982
    %1104 = vmatpush.bf16.msra.mxu0 %v981
    %1105 = vmatpush.bf16.msra.mxu0 %v980
    %1106 = vmatpush.bf16.msra.mxu0 %v979
    %1107 = vmatmul.bf16.gmra.mxu0 %v747
    %v1108 = vpop.f32.mrf.mxu0
    %v1109 = vadd.f32 %v1095, %v1108
    %v1110 = vpop.f32.mrf.mxu0
    %v1111 = vadd.f32 %v1097, %v1110
    %1112 = vdwg.mxu0
    %1113 = vmatpush.bf16.msra.mxu0 %v994
    %1114 = vmatpush.bf16.msra.mxu0 %v993
    %1115 = vmatpush.bf16.msra.mxu0 %v992
    %1116 = vmatpush.bf16.msra.mxu0 %v991
    %1117 = vmatpush.bf16.msra.mxu0 %v990
    %1118 = vmatpush.bf16.msra.mxu0 %v989
    %1119 = vmatpush.bf16.msra.mxu0 %v988
    %1120 = vmatpush.bf16.msra.mxu0 %v987
    %1121 = vmatmul.bf16.gmra.mxu0 %v748
    %v1122 = vpop.f32.mrf.mxu0
    %v1123 = vadd.f32 %v1109, %v1122
    %v1124 = vpop.f32.mrf.mxu0
    %v1125 = vadd.f32 %v1111, %v1124
    %1126 = vdwg.mxu0
    %v1127 = vld [vmem:[#allocation7 + $0x300] sm:$0xf]
    %v1128 = vld [vmem:[#allocation7 + $0x304] sm:$0xf]
    %v1129 = vld [vmem:[#allocation7 + $0x308] sm:$0xf]
    %v1130 = vld [vmem:[#allocation7 + $0x30c] sm:$0xf]
    %v1131 = vld [vmem:[#allocation7 + $0x310] sm:$0xf]
    %v1132 = vld [vmem:[#allocation7 + $0x314] sm:$0xf]
    %v1133 = vld [vmem:[#allocation7 + $0x318] sm:$0xf]
    %v1134 = vld [vmem:[#allocation7 + $0x31c] sm:$0xf]
    %v1135 = vld [vmem:[#allocation7 + $0x320] sm:$0xf]
    %v1136 = vld [vmem:[#allocation7 + $0x324] sm:$0xf]
    %v1137 = vld [vmem:[#allocation7 + $0x328] sm:$0xf]
    %v1138 = vld [vmem:[#allocation7 + $0x32c] sm:$0xf]
    %v1139 = vld [vmem:[#allocation7 + $0x330] sm:$0xf]
    %v1140 = vld [vmem:[#allocation7 + $0x334] sm:$0xf]
    %v1141 = vld [vmem:[#allocation7 + $0x338] sm:$0xf]
    %v1142 = vld [vmem:[#allocation7 + $0x33c] sm:$0xf]
    %v1143 = vld [vmem:[#allocation7 + $0x340] sm:$0xf]
    %v1144 = vld [vmem:[#allocation7 + $0x344] sm:$0xf]
    %v1145 = vld [vmem:[#allocation7 + $0x348] sm:$0xf]
    %v1146 = vld [vmem:[#allocation7 + $0x34c] sm:$0xf]
    %v1147 = vld [vmem:[#allocation7 + $0x350] sm:$0xf]
    %v1148 = vld [vmem:[#allocation7 + $0x354] sm:$0xf]
    %v1149 = vld [vmem:[#allocation7 + $0x358] sm:$0xf]
    %v1150 = vld [vmem:[#allocation7 + $0x35c] sm:$0xf]
    %v1151 = vld [vmem:[#allocation7 + $0x360] sm:$0xf]
    %v1152 = vld [vmem:[#allocation7 + $0x364] sm:$0xf]
    %v1153 = vld [vmem:[#allocation7 + $0x368] sm:$0xf]
    %v1154 = vld [vmem:[#allocation7 + $0x36c] sm:$0xf]
    %v1155 = vld [vmem:[#allocation7 + $0x370] sm:$0xf]
    %v1156 = vld [vmem:[#allocation7 + $0x374] sm:$0xf]
    %v1157 = vld [vmem:[#allocation7 + $0x378] sm:$0xf]
    %v1158 = vld [vmem:[#allocation7 + $0x37c] sm:$0xf]
    %v1159 = vld [vmem:[#allocation7 + $0x380] sm:$0xf]
    %v1160 = vld [vmem:[#allocation7 + $0x384] sm:$0xf]
    %v1161 = vld [vmem:[#allocation7 + $0x388] sm:$0xf]
    %v1162 = vld [vmem:[#allocation7 + $0x38c] sm:$0xf]
    %v1163 = vld [vmem:[#allocation7 + $0x390] sm:$0xf]
    %v1164 = vld [vmem:[#allocation7 + $0x394] sm:$0xf]
    %v1165 = vld [vmem:[#allocation7 + $0x398] sm:$0xf]
    %v1166 = vld [vmem:[#allocation7 + $0x39c] sm:$0xf]
    %v1167 = vld [vmem:[#allocation7 + $0x3a0] sm:$0xf]
    %v1168 = vld [vmem:[#allocation7 + $0x3a4] sm:$0xf]
    %v1169 = vld [vmem:[#allocation7 + $0x3a8] sm:$0xf]
    %v1170 = vld [vmem:[#allocation7 + $0x3ac] sm:$0xf]
    %v1171 = vld [vmem:[#allocation7 + $0x3b0] sm:$0xf]
    %v1172 = vld [vmem:[#allocation7 + $0x3b4] sm:$0xf]
    %v1173 = vld [vmem:[#allocation7 + $0x3b8] sm:$0xf]
    %v1174 = vld [vmem:[#allocation7 + $0x3bc] sm:$0xf]
    %v1175 = vld [vmem:[#allocation7 + $0x3c0] sm:$0xf]
    %v1176 = vld [vmem:[#allocation7 + $0x3c4] sm:$0xf]
    %v1177 = vld [vmem:[#allocation7 + $0x3c8] sm:$0xf]
    %v1178 = vld [vmem:[#allocation7 + $0x3cc] sm:$0xf]
    %v1179 = vld [vmem:[#allocation7 + $0x3d0] sm:$0xf]
    %v1180 = vld [vmem:[#allocation7 + $0x3d4] sm:$0xf]
    %v1181 = vld [vmem:[#allocation7 + $0x3d8] sm:$0xf]
    %v1182 = vld [vmem:[#allocation7 + $0x3dc] sm:$0xf]
    %v1183 = vld [vmem:[#allocation7 + $0x3e0] sm:$0xf]
    %v1184 = vld [vmem:[#allocation7 + $0x3e4] sm:$0xf]
    %v1185 = vld [vmem:[#allocation7 + $0x3e8] sm:$0xf]
    %v1186 = vld [vmem:[#allocation7 + $0x3ec] sm:$0xf]
    %v1187 = vld [vmem:[#allocation7 + $0x3f0] sm:$0xf]
    %v1188 = vld [vmem:[#allocation7 + $0x3f4] sm:$0xf]
    %v1189 = vld [vmem:[#allocation7 + $0x3f8] sm:$0xf]
    %v1190 = vld [vmem:[#allocation7 + $0x3fc] sm:$0xf]
    %v1191 = vld [vmem:[#allocation7 + $0x400] sm:$0xf]
    %v1192 = vld [vmem:[#allocation7 + $0x404] sm:$0xf]
    %v1193 = vld [vmem:[#allocation7 + $0x408] sm:$0xf]
    %v1194 = vld [vmem:[#allocation7 + $0x40c] sm:$0xf]
    %v1195 = vld [vmem:[#allocation7 + $0x410] sm:$0xf]
    %v1196 = vld [vmem:[#allocation7 + $0x414] sm:$0xf]
    %v1197 = vld [vmem:[#allocation7 + $0x418] sm:$0xf]
    %v1198 = vld [vmem:[#allocation7 + $0x41c] sm:$0xf]
    %v1199 = vld [vmem:[#allocation7 + $0x420] sm:$0xf]
    %v1200 = vld [vmem:[#allocation7 + $0x424] sm:$0xf]
    %v1201 = vld [vmem:[#allocation7 + $0x428] sm:$0xf]
    %v1202 = vld [vmem:[#allocation7 + $0x42c] sm:$0xf]
    %v1203 = vld [vmem:[#allocation7 + $0x430] sm:$0xf]
    %v1204 = vld [vmem:[#allocation7 + $0x434] sm:$0xf]
    %v1205 = vld [vmem:[#allocation7 + $0x438] sm:$0xf]
    %v1206 = vld [vmem:[#allocation7 + $0x43c] sm:$0xf]
    %v1207 = vld [vmem:[#allocation7 + $0x440] sm:$0xf]
    %v1208 = vld [vmem:[#allocation7 + $0x444] sm:$0xf]
    %v1209 = vld [vmem:[#allocation7 + $0x448] sm:$0xf]
    %v1210 = vld [vmem:[#allocation7 + $0x44c] sm:$0xf]
    %v1211 = vld [vmem:[#allocation7 + $0x450] sm:$0xf]
    %v1212 = vld [vmem:[#allocation7 + $0x454] sm:$0xf]
    %v1213 = vld [vmem:[#allocation7 + $0x458] sm:$0xf]
    %v1214 = vld [vmem:[#allocation7 + $0x45c] sm:$0xf]
    %v1215 = vld [vmem:[#allocation7 + $0x460] sm:$0xf]
    %v1216 = vld [vmem:[#allocation7 + $0x464] sm:$0xf]
    %v1217 = vld [vmem:[#allocation7 + $0x468] sm:$0xf]
    %v1218 = vld [vmem:[#allocation7 + $0x46c] sm:$0xf]
    %v1219 = vld [vmem:[#allocation7 + $0x470] sm:$0xf]
    %v1220 = vld [vmem:[#allocation7 + $0x474] sm:$0xf]
    %v1221 = vld [vmem:[#allocation7 + $0x478] sm:$0xf]
    %v1222 = vld [vmem:[#allocation7 + $0x47c] sm:$0xf]
    %v1319 = vunpack.c.l.b16 %v1127
    %v1320 = vunpack.c.l.b16 %v1128
    %v1321 = vunpack.c.l.b16 %v1129
    %v1322 = vunpack.c.l.b16 %v1130
    %v1323 = vunpack.c.l.b16 %v1131
    %v1324 = vunpack.c.l.b16 %v1132
    %v1325 = vunpack.c.l.b16 %v1133
    %v1326 = vunpack.c.l.b16 %v1134
    %v1327 = vunpack.c.l.b16 %v1135
    %v1328 = vunpack.c.l.b16 %v1136
    %v1329 = vunpack.c.l.b16 %v1137
    %v1330 = vunpack.c.l.b16 %v1138
    %v1331 = vunpack.c.l.b16 %v1139
    %v1332 = vunpack.c.l.b16 %v1140
    %v1333 = vunpack.c.l.b16 %v1141
    %v1334 = vunpack.c.l.b16 %v1142
    %v1335 = vunpack.c.l.b16 %v1143
    %v1336 = vunpack.c.l.b16 %v1144
    %v1337 = vunpack.c.l.b16 %v1145
    %v1338 = vunpack.c.l.b16 %v1146
    %v1339 = vunpack.c.l.b16 %v1147
    %v1340 = vunpack.c.l.b16 %v1148
    %v1341 = vunpack.c.l.b16 %v1149
    %v1342 = vunpack.c.l.b16 %v1150
    %v1343 = vunpack.c.l.b16 %v1151
    %v1344 = vunpack.c.l.b16 %v1152
    %v1345 = vunpack.c.l.b16 %v1153
    %v1346 = vunpack.c.l.b16 %v1154
    %v1347 = vunpack.c.l.b16 %v1155
    %v1348 = vunpack.c.l.b16 %v1156
    %v1349 = vunpack.c.l.b16 %v1157
    %v1350 = vunpack.c.l.b16 %v1158
    %v1351 = vunpack.c.l.b16 %v1159
    %v1352 = vunpack.c.l.b16 %v1160
    %v1353 = vunpack.c.l.b16 %v1161
    %v1354 = vunpack.c.l.b16 %v1162
    %v1355 = vunpack.c.l.b16 %v1163
    %v1356 = vunpack.c.l.b16 %v1164
    %v1357 = vunpack.c.l.b16 %v1165
    %v1358 = vunpack.c.l.b16 %v1166
    %v1359 = vunpack.c.l.b16 %v1167
    %v1360 = vunpack.c.l.b16 %v1168
    %v1361 = vunpack.c.l.b16 %v1169
    %v1362 = vunpack.c.l.b16 %v1170
    %v1363 = vunpack.c.l.b16 %v1171
    %v1364 = vunpack.c.l.b16 %v1172
    %v1365 = vunpack.c.l.b16 %v1173
    %v1366 = vunpack.c.l.b16 %v1174
    %v1367 = vunpack.c.l.b16 %v1175
    %v1368 = vunpack.c.l.b16 %v1176
    %v1369 = vunpack.c.l.b16 %v1177
    %v1370 = vunpack.c.l.b16 %v1178
    %v1371 = vunpack.c.l.b16 %v1179
    %v1372 = vunpack.c.l.b16 %v1180
    %v1373 = vunpack.c.l.b16 %v1181
    %v1374 = vunpack.c.l.b16 %v1182
    %v1375 = vunpack.c.l.b16 %v1183
    %v1376 = vunpack.c.l.b16 %v1184
    %v1377 = vunpack.c.l.b16 %v1185
    %v1378 = vunpack.c.l.b16 %v1186
    %v1379 = vunpack.c.l.b16 %v1187
    %v1380 = vunpack.c.l.b16 %v1188
    %v1381 = vunpack.c.l.b16 %v1189
    %v1382 = vunpack.c.l.b16 %v1190
    %v1383 = vunpack.c.l.b16 %v1191
    %v1384 = vunpack.c.l.b16 %v1192
    %v1385 = vunpack.c.l.b16 %v1193
    %v1386 = vunpack.c.l.b16 %v1194
    %v1387 = vunpack.c.l.b16 %v1195
    %v1388 = vunpack.c.l.b16 %v1196
    %v1389 = vunpack.c.l.b16 %v1197
    %v1390 = vunpack.c.l.b16 %v1198
    %v1391 = vunpack.c.l.b16 %v1199
    %v1392 = vunpack.c.l.b16 %v1200
    %v1393 = vunpack.c.l.b16 %v1201
    %v1394 = vunpack.c.l.b16 %v1202
    %v1395 = vunpack.c.l.b16 %v1203
    %v1396 = vunpack.c.l.b16 %v1204
    %v1397 = vunpack.c.l.b16 %v1205
    %v1398 = vunpack.c.l.b16 %v1206
    %v1399 = vunpack.c.l.b16 %v1207
    %v1400 = vunpack.c.l.b16 %v1208
    %v1401 = vunpack.c.l.b16 %v1209
    %v1402 = vunpack.c.l.b16 %v1210
    %v1403 = vunpack.c.l.b16 %v1211
    %v1404 = vunpack.c.l.b16 %v1212
    %v1405 = vunpack.c.l.b16 %v1213
    %v1406 = vunpack.c.l.b16 %v1214
    %v1407 = vunpack.c.l.b16 %v1215
    %v1408 = vunpack.c.l.b16 %v1216
    %v1409 = vunpack.c.l.b16 %v1217
    %v1410 = vunpack.c.l.b16 %v1218
    %v1411 = vunpack.c.l.b16 %v1219
    %v1412 = vunpack.c.l.b16 %v1220
    %v1413 = vunpack.c.l.b16 %v1221
    %v1414 = vunpack.c.l.b16 %v1222
    %v1415 = vpack.c.b16 %v1320, %v1319
    %v1416 = vpack.c.b16 %v1322, %v1321
    %v1417 = vpack.c.b16 %v1324, %v1323
    %v1418 = vpack.c.b16 %v1326, %v1325
    %v1419 = vpack.c.b16 %v1328, %v1327
    %v1420 = vpack.c.b16 %v1330, %v1329
    %v1421 = vpack.c.b16 %v1332, %v1331
    %v1422 = vpack.c.b16 %v1334, %v1333
    %v1423 = vpack.c.b16 %v1336, %v1335
    %v1424 = vpack.c.b16 %v1338, %v1337
    %v1425 = vpack.c.b16 %v1340, %v1339
    %v1426 = vpack.c.b16 %v1342, %v1341
    %v1427 = vpack.c.b16 %v1344, %v1343
    %v1428 = vpack.c.b16 %v1346, %v1345
    %v1429 = vpack.c.b16 %v1348, %v1347
    %v1430 = vpack.c.b16 %v1350, %v1349
    %v1431 = vpack.c.b16 %v1352, %v1351
    %v1432 = vpack.c.b16 %v1354, %v1353
    %v1433 = vpack.c.b16 %v1356, %v1355
    %v1434 = vpack.c.b16 %v1358, %v1357
    %v1435 = vpack.c.b16 %v1360, %v1359
    %v1436 = vpack.c.b16 %v1362, %v1361
    %v1437 = vpack.c.b16 %v1364, %v1363
    %v1438 = vpack.c.b16 %v1366, %v1365
    %v1439 = vpack.c.b16 %v1368, %v1367
    %v1440 = vpack.c.b16 %v1370, %v1369
    %v1441 = vpack.c.b16 %v1372, %v1371
    %v1442 = vpack.c.b16 %v1374, %v1373
    %v1443 = vpack.c.b16 %v1376, %v1375
    %v1444 = vpack.c.b16 %v1378, %v1377
    %v1445 = vpack.c.b16 %v1380, %v1379
    %v1446 = vpack.c.b16 %v1382, %v1381
    %v1447 = vpack.c.b16 %v1384, %v1383
    %v1448 = vpack.c.b16 %v1386, %v1385
    %v1449 = vpack.c.b16 %v1388, %v1387
    %v1450 = vpack.c.b16 %v1390, %v1389
    %v1451 = vpack.c.b16 %v1392, %v1391
    %v1452 = vpack.c.b16 %v1394, %v1393
    %v1453 = vpack.c.b16 %v1396, %v1395
    %v1454 = vpack.c.b16 %v1398, %v1397
    %v1455 = vpack.c.b16 %v1400, %v1399
    %v1456 = vpack.c.b16 %v1402, %v1401
    %v1457 = vpack.c.b16 %v1404, %v1403
    %v1458 = vpack.c.b16 %v1406, %v1405
    %v1459 = vpack.c.b16 %v1408, %v1407
    %v1460 = vpack.c.b16 %v1410, %v1409
    %v1461 = vpack.c.b16 %v1412, %v1411
    %v1462 = vpack.c.b16 %v1414, %v1413
    %1511 = vmatpush.bf16.msra.mxu0 %v1422
    %1512 = vmatpush.bf16.msra.mxu0 %v1421
    %1513 = vmatpush.bf16.msra.mxu0 %v1420
    %1514 = vmatpush.bf16.msra.mxu0 %v1419
    %1515 = vmatpush.bf16.msra.mxu0 %v1418
    %1516 = vmatpush.bf16.msra.mxu0 %v1417
    %1517 = vmatpush.bf16.msra.mxu0 %v1416
    %1518 = vmatpush.bf16.msra.mxu0 %v1415
    %1519 = vmatmul.bf16.gmra.mxu0 %v125
    %v1520 = vpop.f32.mrf.mxu0
    %v1521 = vadd.f32 0.0, %v1520
    %v1522 = vpop.f32.mrf.mxu0
    %v1523 = vadd.f32 0.0, %v1522
    %1524 = vdwg.mxu0
    %1525 = vmatpush.bf16.msra.mxu0 %v1430
    %1526 = vmatpush.bf16.msra.mxu0 %v1429
    %1527 = vmatpush.bf16.msra.mxu0 %v1428
    %1528 = vmatpush.bf16.msra.mxu0 %v1427
    %1529 = vmatpush.bf16.msra.mxu0 %v1426
    %1530 = vmatpush.bf16.msra.mxu0 %v1425
    %1531 = vmatpush.bf16.msra.mxu0 %v1424
    %1532 = vmatpush.bf16.msra.mxu0 %v1423
    %1533 = vmatmul.bf16.gmra.mxu0 %v126
    %v1534 = vpop.f32.mrf.mxu0
    %v1535 = vadd.f32 %v1521, %v1534
    %v1536 = vpop.f32.mrf.mxu0
    %v1537 = vadd.f32 %v1523, %v1536
    %1538 = vdwg.mxu0
    %1539 = vmatpush.bf16.msra.mxu0 %v1438
    %1540 = vmatpush.bf16.msra.mxu0 %v1437
    %1541 = vmatpush.bf16.msra.mxu0 %v1436
    %1542 = vmatpush.bf16.msra.mxu0 %v1435
    %1543 = vmatpush.bf16.msra.mxu0 %v1434
    %1544 = vmatpush.bf16.msra.mxu0 %v1433
    %1545 = vmatpush.bf16.msra.mxu0 %v1432
    %1546 = vmatpush.bf16.msra.mxu0 %v1431
    %1547 = vmatmul.bf16.gmra.mxu0 %v127
    %v1548 = vpop.f32.mrf.mxu0
    %v1549 = vadd.f32 %v1535, %v1548
    %v1550 = vpop.f32.mrf.mxu0
    %v1551 = vadd.f32 %v1537, %v1550
    %1552 = vdwg.mxu0
    %1553 = vmatpush.bf16.msra.mxu0 %v1446
    %1554 = vmatpush.bf16.msra.mxu0 %v1445
    %1555 = vmatpush.bf16.msra.mxu0 %v1444
    %1556 = vmatpush.bf16.msra.mxu0 %v1443
    %1557 = vmatpush.bf16.msra.mxu0 %v1442
    %1558 = vmatpush.bf16.msra.mxu0 %v1441
    %1559 = vmatpush.bf16.msra.mxu0 %v1440
    %1560 = vmatpush.bf16.msra.mxu0 %v1439
    %1561 = vmatmul.bf16.gmra.mxu0 %v128
    %v1562 = vpop.f32.mrf.mxu0
    %v1563 = vadd.f32 %v1549, %v1562
    %v1564 = vpop.f32.mrf.mxu0
    %v1565 = vadd.f32 %v1551, %v1564
    %1566 = vdwg.mxu0
    %1567 = vmatpush.bf16.msra.mxu0 %v1454
    %1568 = vmatpush.bf16.msra.mxu0 %v1453
    %1569 = vmatpush.bf16.msra.mxu0 %v1452
    %1570 = vmatpush.bf16.msra.mxu0 %v1451
    %1571 = vmatpush.bf16.msra.mxu0 %v1450
    %1572 = vmatpush.bf16.msra.mxu0 %v1449
    %1573 = vmatpush.bf16.msra.mxu0 %v1448
    %1574 = vmatpush.bf16.msra.mxu0 %v1447
    %1575 = vmatmul.bf16.gmra.mxu0 %v129
    %v1576 = vpop.f32.mrf.mxu0
    %v1577 = vadd.f32 %v1563, %v1576
    %v1578 = vpop.f32.mrf.mxu0
    %v1579 = vadd.f32 %v1565, %v1578
    %1580 = vdwg.mxu0
    %1581 = vmatpush.bf16.msra.mxu0 %v1462
    %1582 = vmatpush.bf16.msra.mxu0 %v1461
    %1583 = vmatpush.bf16.msra.mxu0 %v1460
    %1584 = vmatpush.bf16.msra.mxu0 %v1459
    %1585 = vmatpush.bf16.msra.mxu0 %v1458
    %1586 = vmatpush.bf16.msra.mxu0 %v1457
    %1587 = vmatpush.bf16.msra.mxu0 %v1456
    %1588 = vmatpush.bf16.msra.mxu0 %v1455
    %1589 = vmatmul.bf16.gmra.mxu0 %v130
    %v1590 = vpop.f32.mrf.mxu0
    %v1591 = vadd.f32 %v1577, %v1590
    %v1592 = vpop.f32.mrf.mxu0
    %v1593 = vadd.f32 %v1579, %v1592
    %1594 = vdwg.mxu0
    %v1595 = vadd.f32 %v1123, %v1591
    %v1596 = vadd.f32 %v1125, %v1593
    %v1597 = vld [vmem:[%s3] sm:$0x1]
    %v1599 = vperm.slane %v1597, 0
    %v1601 = vadd.f32 %v1595, %v1599
    %v1602 = vadd.f32 %v1596, %v1599
    %1603 = vst [vmem:[#allocation8] sm:$0xff] %v1601
    %1604 = vst [vmem:[#allocation8 + $0x8] sm:$0xff] %v1602
    // Predicated region
    $region30: #{tpu_custom_call.1} parent=1 // pred_check
      _
    $region31: #{tpu_custom_call.1} parent=1 // pred_check_branch
      %1606 = sbr.rel (0) target = $region33
    $region32: #{tpu_custom_call.1} parent=1 // pred_region
      %1608 = vsyncadd [#allocation4], 0
      %s1609 = sshll.u32 [#allocation8], 4
      %s1610 = int_to_ptr.vmem [resolvable:$true] %s1609
      %s1611 = sshll.u32 %s4, 4
      %s1612 = int_to_ptr.hbm [resolvable:$true] %s1611
      %1617 = dma.vmem_to_hbm [thread:$0]  %s1610, 256, %s1612, [#allocation4], 128, 128, 8
    $region33: #{tpu_custom_call.1} parent=1 // pred_fallthru
      _
    // Predicated region
    $region34: #{tpu_custom_call.1} parent=1 // pred_check
      _
    $region35: #{tpu_custom_call.1} parent=1 // pred_check_branch
      %1619 = sbr.rel (0) target = $region37
    $region36: #{tpu_custom_call.1} parent=1 // pred_region
      %1621 = dma.done [#allocation4], 256
    $region37: #{tpu_custom_call.1} parent=1 // pred_fallthru
      _
    %1622 = vsyncpa [#allocation3], 1
    %1623 = vsyncpa [#allocation6], 1
    %1624 = vsyncpa [#allocation4], 1

</llo_original>
